<compile_context>
chip_gen: v7x
topology: tpu7x:2x2x1
jax: 0.10.0
libtpu: 0.0.40
codegen_flags: <defaults>
</compile_context>

<pallas_src>
import jax
import jax.numpy as jnp
from jax import lax
from jax.experimental import pallas as pl
from jax.experimental.pallas import tpu as pltpu


def _fold_to_lanes(x, acc_w):
    """Reduce (rows, W) along lanes to (rows, acc_w).

    acc_w == 128: only 128-aligned static slices + VPU adds (no relayout,
    no XLU cross-lane reduce).  acc_w == 1 (tiny single-block problems whose
    width is not a multiple of 128): plain jnp.sum fallback.
    """
    if acc_w == 1:
        return jnp.sum(x, axis=1, keepdims=True)
    _, w = x.shape
    n = w // 128
    carry = None
    while n > 1:
        if n % 2:
            last = x[:, (n - 1) * 128:n * 128]
            carry = last if carry is None else carry + last
            n -= 1
        half = n // 2
        x = x[:, :half * 128] + x[:, half * 128:n * 128]
        n = half
    out = x[:, :128]
    if carry is not None:
        out = out + carry
    return out


def _make_scale_head_kernel(tile_l, n_tiles, tail_len, acc_w):
    """Kernel with static tiling constants closed over."""
    needs_mask = tail_len != tile_l  # only the last tile is ragged

    def accumulate(mag_ref, h_ref, dot_ref, norm_ref, masked):
        # .float() semantics of the PyTorch module: cast to f32 in-kernel.
        m = mag_ref[...].astype(jnp.float32)
        h = h_ref[...].astype(jnp.float32)
        hm = h * m
        hh = h * h
        if masked:
            lane = lax.broadcasted_iota(jnp.int32, hm.shape, 1)
            valid = lane < tail_len
            # Must remain a true select (NOT multiply-by-mask) so NaN/Inf
            # garbage past the array end cannot leak into the sums.
            hm = jnp.where(valid, hm, 0.0)
            hh = jnp.where(valid, hh, 0.0)
        dot_ref[...] += _fold_to_lanes(hm, acc_w)
        norm_ref[...] += _fold_to_lanes(hh, acc_w)

    def kernel(mag_ref, h_ref, dot_ref, norm_ref):
        t = pl.program_id(0)

        @pl.when(t == 0)
        def _init():
            dot_ref[...] = jnp.zeros_like(dot_ref)
            norm_ref[...] = jnp.zeros_like(norm_ref)

        if needs_mask:
            @pl.when(t != n_tiles - 1)
            def _body():
                accumulate(mag_ref, h_ref, dot_ref, norm_ref, False)

            @pl.when(t == n_tiles - 1)
            def _tail():
                accumulate(mag_ref, h_ref, dot_ref, norm_ref, True)
        else:
            accumulate(mag_ref, h_ref, dot_ref, norm_ref, False)

    return kernel


def scale_head(mag, height, *, target_block_bytes=None, vmem_limit_bytes=None):
    """mag, height: (B, ...) arrays (any float dtype). Returns (B,) f32."""
    assert mag.shape == height.shape, "mag/height must have the same shape"
    B = mag.shape[0]
    L = 1
    for d in mag.shape[1:]:
        L *= d

    item_m = jnp.dtype(mag.dtype).itemsize
    item_h = jnp.dtype(height.dtype).itemsize
    itemsize = max(item_m, item_h)
    # Minimum useful sublane count for the narrower dtype (8 f32, 16 bf16, ...).
    min_sublanes = max(8, 32 // min(item_m, item_h))

    # -- generation-aware block / VMEM sizing --------------------------------
    try:
        vmem_cap = int(pltpu.get_tpu_info().vmem_capacity_bytes)
    except Exception:
        vmem_cap = 64 * 1024 * 1024  # v7x-safe conservative default
    if target_block_bytes is None:
        # ~4 MiB per input block; 2 inputs x 2 pipeline buffers ~= 16 MiB.
        target_block_bytes = min(4 << 20, max(1 << 20, vmem_cap // 16))
    if vmem_limit_bytes is None:
        vmem_limit_bytes = int(min(vmem_cap // 2,
                                   max(32 << 20, 5 * target_block_bytes)))

    # -- pack the sublane dimension: (B, L) -> (B*G, Lr) ----------------------
    G = 1
    pad = 0
    if B < min_sublanes:
        g_target = max(1, min_sublanes // B)
        G = g_target
        while G > 1 and L % G != 0:
            G -= 1
        if G < g_target:
            # No small divisor of L: zero-pad the reduction axis once so all
            # sublane rows stay dense.  Zero pads contribute 0 to both sums.
            G = g_target
            pad = (-L) % G
    Lr = (L + pad) // G
    rows = B * G

    mag2d = jnp.reshape(mag, (B, L))
    h2d = jnp.reshape(height, (B, L))
    if pad:
        mag2d = jnp.pad(mag2d, ((0, 0), (0, pad)))
        h2d = jnp.pad(h2d, ((0, 0), (0, pad)))
    mag2d = jnp.reshape(mag2d, (rows, Lr))
    h2d = jnp.reshape(h2d, (rows, Lr))

    # -- reduction tiling: lane-aligned, ~target_block_bytes per input -------
    rows_padded = ((rows + 7) // 8) * 8
    bytes_per_lane = rows_padded * itemsize
    tile_l = max(128, (target_block_bytes // bytes_per_lane) // 128 * 128)
    if tile_l >= Lr:
        tile_l = Lr                       # single-step path
    nt = (Lr + tile_l - 1) // tile_l      # grid steps along the reduction
    tail_len = Lr - (nt - 1) * tile_l     # static length of the final tile
    acc_w = 128 if tile_l % 128 == 0 else 1

    kernel = _make_scale_head_kernel(tile_l, nt, tail_len, acc_w)

    total_elems = rows * Lr
    cost = pl.CostEstimate(
        flops=4 * total_elems,
        transcendentals=0,
        bytes_accessed=total_elems * (item_m + item_h) + 2 * rows * acc_w * 4,
    )

    dot_out, norm_out = pl.pallas_call(
        kernel,
        out_shape=(
            jax.ShapeDtypeStruct((rows, acc_w), jnp.float32),
            jax.ShapeDtypeStruct((rows, acc_w), jnp.float32),
        ),
        grid_spec=pltpu.PrefetchScalarGridSpec(
            num_scalar_prefetch=0,
            grid=(nt,),
            in_specs=[
                pl.BlockSpec((rows, tile_l), lambda t: (0, t)),
                pl.BlockSpec((rows, tile_l), lambda t: (0, t)),
            ],
            out_specs=(
                pl.BlockSpec((rows, acc_w), lambda t: (0, 0)),
                pl.BlockSpec((rows, acc_w), lambda t: (0, 0)),
            ),
        ),
        compiler_params=pltpu.CompilerParams(
            dimension_semantics=("arbitrary",),
            vmem_limit_bytes=int(vmem_limit_bytes),
        ),
        cost_estimate=cost,
    )(mag2d, h2d)

    # Tiny epilogue: cross-lane reduce + combine the G row-groups per batch.
    dot_b = jnp.sum(jnp.reshape(jnp.sum(dot_out, axis=1), (B, G)), axis=1)
    norm_b = jnp.sum(jnp.reshape(jnp.sum(norm_out, axis=1), (B, G)), axis=1)
    return dot_b / (norm_b + 0.01)


def _reference(mag, height):
    B = mag.shape[0]
    m = jnp.reshape(mag, (B, -1)).astype(jnp.float32)
    h = jnp.reshape(height, (B, -1)).astype(jnp.float32)
    denom = jnp.sum(h * h, axis=1) + 0.01
    return jnp.sum(h * m, axis=1) / denom


if __name__ == "__main__":
    key = jax.random.PRNGKey(0)
    k1, k2, k3, k4 = jax.random.split(key, 4)

    # 1) Primary case: NCHW, batch=2, channels=4, spatial 16x16 -> L = 1024.
    mag = jax.random.normal(k1, (2, 4, 16, 16), dtype=jnp.float32)
    height = jax.random.normal(k2, (2, 4, 16, 16), dtype=jnp.float32)
    scale = jax.block_until_ready(scale_head(mag, height))
    ref = _reference(mag, height)
    assert scale.shape == (2,)
    assert jnp.allclose(scale, ref, atol=1e-5, rtol=1e-5), (scale, ref)

    # 2) Multi-tile + masked ragged-tail path (tiny forced tiles).
    mag2 = jax.random.normal(k3, (2, 3, 20, 20), dtype=jnp.float32)
    h2 = jax.random.normal(k4, (2, 3, 20, 20), dtype=jnp.float32)
    s2 = jax.block_until_ready(scale_head(mag2, h2, target_block_bytes=4096))
    r2 = _reference(mag2, h2)
    assert jnp.allclose(s2, r2, atol=1e-5, rtol=1e-5), (s2, r2)

    # 3) Longer multi-step reduction with a ragged tail.
    mag3 = jax.random.normal(k1, (2, 4, 33, 32), dtype=jnp.float32)
    h3 = jax.random.normal(k2, (2, 4, 33, 32), dtype=jnp.float32)
    s3 = jax.block_until_ready(scale_head(mag3, h3, target_block_bytes=4096))
    r3 = _reference(mag3, h3)
    assert jnp.allclose(s3, r3, atol=1e-5, rtol=1e-5), (s3, r3)

    # 4) L with no small divisor (L = 721): exercises the zero-pad fallback
    #    and the acc_w == 1 single-block path.
    mag4 = jax.random.normal(k3, (2, 1, 7, 103), dtype=jnp.float32)
    h4 = jax.random.normal(k4, (2, 1, 7, 103), dtype=jnp.float32)
    s4 = jax.block_until_ready(scale_head(mag4, h4))
    r4 = _reference(mag4, h4)
    assert jnp.allclose(s4, r4, atol=1e-5, rtol=1e-5), (s4, r4)

    # 5) bf16 inputs: in-kernel .float() cast, deeper sublane packing (G=8).
    mag5 = jax.random.normal(k1, (2, 4, 16, 16), dtype=jnp.bfloat16)
    h5 = jax.random.normal(k2, (2, 4, 16, 16), dtype=jnp.bfloat16)
    s5 = jax.block_until_ready(scale_head(mag5, h5))
    r5 = _reference(mag5, h5)
    assert jnp.allclose(s5, r5, atol=1e-4, rtol=1e-4), (s5, r5)

    print("KERNEL_OK")
</pallas_src>

<mosaic_0001>
module attributes {stable_mosaic.version = 11 : i64} {
  func.func @kernel(%arg0: i32, %arg1: memref<8x256xf32, #tpu.memory_space<vmem>>, %arg2: memref<8x256xf32, #tpu.memory_space<vmem>>, %arg3: memref<8x128xf32, #tpu.memory_space<vmem>>, %arg4: memref<8x128xf32, #tpu.memory_space<vmem>>) attributes {dimension_semantics = [#tpu.dimension_semantics<arbitrary>], iteration_bounds = array<i64: 1>, scalar_prefetch = 0 : i64, scratch_operands = 0 : i64, tpu.core_type = #tpu.core_type<tc>, window_params = [{transform_indices = @transform_0, window_bounds = array<i64: 8, 256>}, {transform_indices = @transform_1, window_bounds = array<i64: 8, 256>}, {pipeline_mode = #tpu.pipeline_mode<synchronous>, transform_indices = @transform_2, window_bounds = array<i64: 8, 128>}, {pipeline_mode = #tpu.pipeline_mode<synchronous>, transform_indices = @transform_3, window_bounds = array<i64: 8, 128>}]} {
    %c0_i32 = arith.constant 0 : i32
    %0 = arith.cmpi eq, %arg0, %c0_i32 : i32
    %1 = arith.extui %0 : i1 to i32
    %c0_i32_0 = arith.constant 0 : i32
    %2 = arith.cmpi ne, %1, %c0_i32_0 : i32
    scf.if %2 {
      %cst = arith.constant 0.000000e+00 : f32
      %19 = vector.broadcast %cst : f32 to vector<8x128xf32>
      %c0_12 = arith.constant 0 : index
      %c0_13 = arith.constant 0 : index
      %20 = vector.load %arg3[%c0_12, %c0_13] : memref<8x128xf32, #tpu.memory_space<vmem>>, vector<8x128xf32>
      tpu.vector_store %arg3[%c0_12, %c0_13], %19 {strides = array<i32>} : memref<8x128xf32, #tpu.memory_space<vmem>>, vector<8x128xf32>,
      %cst_14 = arith.constant 0.000000e+00 : f32
      %21 = vector.broadcast %cst_14 : f32 to vector<8x128xf32>
      %c0_15 = arith.constant 0 : index
      %c0_16 = arith.constant 0 : index
      %22 = vector.load %arg4[%c0_15, %c0_16] : memref<8x128xf32, #tpu.memory_space<vmem>>, vector<8x128xf32>
      tpu.vector_store %arg4[%c0_15, %c0_16], %21 {strides = array<i32>} : memref<8x128xf32, #tpu.memory_space<vmem>>, vector<8x128xf32>,
    } else {
    }
    %c0 = arith.constant 0 : index
    %c0_1 = arith.constant 0 : index
    %3 = vector.load %arg1[%c0, %c0_1] : memref<8x256xf32, #tpu.memory_space<vmem>>, vector<8x256xf32>
    %c0_2 = arith.constant 0 : index
    %c0_3 = arith.constant 0 : index
    %4 = vector.load %arg2[%c0_2, %c0_3] : memref<8x256xf32, #tpu.memory_space<vmem>>, vector<8x256xf32>
    %5 = arith.mulf %4, %3 : vector<8x256xf32>
    %6 = arith.mulf %4, %4 : vector<8x256xf32>
    %c0_4 = arith.constant 0 : index
    %c0_5 = arith.constant 0 : index
    %7 = vector.load %arg3[%c0_4, %c0_5] : memref<8x128xf32, #tpu.memory_space<vmem>>, vector<8x128xf32>
    %8 = vector.extract_strided_slice %5 {offsets = [0, 0], sizes = [8, 128], strides = [1, 1]} : vector<8x256xf32> to vector<8x128xf32>
    %9 = vector.extract_strided_slice %5 {offsets = [0, 128], sizes = [8, 128], strides = [1, 1]} : vector<8x256xf32> to vector<8x128xf32>
    %10 = arith.addf %8, %9 : vector<8x128xf32>
    %11 = arith.addf %7, %10 : vector<8x128xf32>
    %c0_6 = arith.constant 0 : index
    %c0_7 = arith.constant 0 : index
    %12 = vector.load %arg3[%c0_6, %c0_7] : memref<8x128xf32, #tpu.memory_space<vmem>>, vector<8x128xf32>
    tpu.vector_store %arg3[%c0_6, %c0_7], %11 {strides = array<i32>} : memref<8x128xf32, #tpu.memory_space<vmem>>, vector<8x128xf32>,
    %c0_8 = arith.constant 0 : index
    %c0_9 = arith.constant 0 : index
    %13 = vector.load %arg4[%c0_8, %c0_9] : memref<8x128xf32, #tpu.memory_space<vmem>>, vector<8x128xf32>
    %14 = vector.extract_strided_slice %6 {offsets = [0, 0], sizes = [8, 128], strides = [1, 1]} : vector<8x256xf32> to vector<8x128xf32>
    %15 = vector.extract_strided_slice %6 {offsets = [0, 128], sizes = [8, 128], strides = [1, 1]} : vector<8x256xf32> to vector<8x128xf32>
    %16 = arith.addf %14, %15 : vector<8x128xf32>
    %17 = arith.addf %13, %16 : vector<8x128xf32>
    %c0_10 = arith.constant 0 : index
    %c0_11 = arith.constant 0 : index
    %18 = vector.load %arg4[%c0_10, %c0_11] : memref<8x128xf32, #tpu.memory_space<vmem>>, vector<8x128xf32>
    tpu.vector_store %arg4[%c0_10, %c0_11], %17 {strides = array<i32>} : memref<8x128xf32, #tpu.memory_space<vmem>>, vector<8x128xf32>,
    return
  }
  func.func @transform_0(%arg0: i32) -> (i32, i32) {
    %c0_i32 = arith.constant 0 : i32
    %c0_i32_0 = arith.constant 0 : i32
    return %c0_i32, %arg0 : i32, i32
  }
  func.func @transform_1(%arg0: i32) -> (i32, i32) {
    %c0_i32 = arith.constant 0 : i32
    %c0_i32_0 = arith.constant 0 : i32
    return %c0_i32, %arg0 : i32, i32
  }
  func.func @transform_2(%arg0: i32) -> (i32, i32) {
    %c0_i32 = arith.constant 0 : i32
    %c0_i32_0 = arith.constant 0 : i32
    %c0_i32_1 = arith.constant 0 : i32
    return %c0_i32, %c0_i32_0 : i32, i32
  }
  func.func @transform_3(%arg0: i32) -> (i32, i32) {
    %c0_i32 = arith.constant 0 : i32
    %c0_i32_0 = arith.constant 0 : i32
    %c0_i32_1 = arith.constant 0 : i32
    return %c0_i32, %c0_i32_0 : i32, i32
  }
}

</mosaic_0001>

<llo_original>
// kernel: tpu_custom_call.1
$region0: #{tpu_custom_call.1}
  #allocation0 [shape = 'u32[]', space=smem, size = 0x4, offset = 0x4, fixed_abs, tag = 'smem constant byte address 0x4 - core index']
  #allocation1 [shape = 'u32[144,128]{1,0:T(1,128)}', space=vmem, size = 0x12000, scoped, tag = 'internal scratch']
  %s0 = inlined_call_operand.hbm [shape: f32[8,256], index: 0, kind: input, shape index: {}]
  %s1 = inlined_call_operand.hbm [shape: f32[8,256], index: 1, kind: input, shape index: {}]
  %s2 = inlined_call_operand.hbm [shape: f32[8,128], index: 2, kind: output, shape index: {0}]
  %s3 = inlined_call_operand.hbm [shape: f32[8,128], index: 3, kind: output, shape index: {1}]
  %4 = xla_tuple %s2, %s3
  %s5 = sld [smem:[#allocation0]]
  $region38: #{tpu_custom_call.1} parent=0
    _
  %s7 = ssub.s32 1, %s5
  %s8 = scalar_select 0, %s7, %s5
  $region1: #{tpu_custom_call.1} parent=0
    #allocation2 [shape = 'u8[8192]{0}', space=vmem, size = 0x2000, scoped, tag = 'input window, operand 0, single buffered']
    #allocation3 [shape = 's32[1]{0}', space=sflag, size = 0x4, scoped, tag = 'scoped memory for tpu_custom_call.1']
    #allocation4 [shape = 's32[1]{0}', space=sflag, size = 0x4, scoped, tag = 'scoped memory for tpu_custom_call.1']
    #allocation5 [shape = 'u8[8192]{0}', space=vmem, size = 0x2000, scoped, tag = 'input window, operand 1, single buffered']
    #allocation6 [shape = 's32[1]{0}', space=sflag, size = 0x4, scoped, tag = 'scoped memory for tpu_custom_call.1']
    #allocation7 [shape = 'u8[4096]{0}', space=vmem, size = 0x1000, scoped, tag = 'output window, operand 0, single buffered']
    #allocation8 [shape = 'u8[4096]{0}', space=vmem, size = 0x1000, scoped, tag = 'output window, operand 1, single buffered']
    #allocation9 [shape = 's32[1]{0}', space=sflag, size = 0x4, scoped, tag = 'scoped memory for tpu_custom_call.1']
    %9 = vsyncpa [#allocation3], 0
    %10 = vsyncpa [#allocation6], 0
    %11 = vsyncpa [#allocation4], 0
    %12 = vsyncpa [#allocation9], 0
    // Predicated region
    $region2: #{tpu_custom_call.1} parent=1 // pred_check
      _
    $region3: #{tpu_custom_call.1} parent=1 // pred_check_branch
      %14 = sbr.rel (0) target = $region5
    $region4: #{tpu_custom_call.1} parent=1 // pred_region
      %s16 = ssub.s32 256, 256
      %17 = vsyncadd [#allocation3], %s16
      %s19 = sshll.u32 [#allocation2], 4
      %s20 = int_to_ptr.vmem [resolvable:$true] %s19
      %22 = dma.hbm_to_vmem [thread:$0]  %s0, 256, %s20, [#allocation3]
    $region5: #{tpu_custom_call.1} parent=1 // pred_fallthru
      _
    // Predicated region
    $region6: #{tpu_custom_call.1} parent=1 // pred_check
      _
    $region7: #{tpu_custom_call.1} parent=1 // pred_check_branch
      %24 = sbr.rel (0) target = $region9
    $region8: #{tpu_custom_call.1} parent=1 // pred_region
      %s26 = ssub.s32 256, 256
      %27 = vsyncadd [#allocation6], %s26
      %s29 = sshll.u32 [#allocation5], 4
      %s30 = int_to_ptr.vmem [resolvable:$true] %s29
      %32 = dma.hbm_to_vmem [thread:$0]  %s1, 256, %s30, [#allocation6]
    $region9: #{tpu_custom_call.1} parent=1 // pred_fallthru
      _
    // Predicated region
    $region10: #{tpu_custom_call.1} parent=1 // pred_check
      _
    $region11: #{tpu_custom_call.1} parent=1 // pred_check_branch
      %34 = sbr.rel (0) target = $region13
    $region12: #{tpu_custom_call.1} parent=1 // pred_region
      %35 = dma.done [#allocation3], 256
    $region13: #{tpu_custom_call.1} parent=1 // pred_fallthru
      _
    // Predicated region
    $region14: #{tpu_custom_call.1} parent=1 // pred_check
      _
    $region15: #{tpu_custom_call.1} parent=1 // pred_check_branch
      %37 = sbr.rel (0) target = $region17
    $region16: #{tpu_custom_call.1} parent=1 // pred_region
      %38 = dma.done [#allocation6], 256
    $region17: #{tpu_custom_call.1} parent=1 // pred_fallthru
      _
    %p39 = scmp.eq.s32.totalorder 0, 0
    // Predicated region
    $region18: #{tpu_custom_call.1} parent=1 // pred_check
      %p40 = pneg %p39
    $region19: #{tpu_custom_call.1} parent=1 // pred_check_branch
      %42 = sbr.rel (%p40) target = $region21
    $region20: #{tpu_custom_call.1} parent=1 // pred_region
      %43 = vst [vmem:[#allocation7] sm:$0xff] 0.0
      %44 = vst [vmem:[#allocation8] sm:$0xff] 0.0
    $region21: #{tpu_custom_call.1} parent=1 // pred_fallthru
      _
    %v45 = vld [vmem:[#allocation2] sm:$0xff]
    %v46 = vld [vmem:[#allocation2 + $0x8] sm:$0xff]
    %v47 = vld [vmem:[#allocation5] sm:$0xff]
    %v48 = vld [vmem:[#allocation5 + $0x8] sm:$0xff]
    %v49 = vmul.f32 %v47, %v45
    %v50 = vmul.f32 %v48, %v46
    %v51 = vmul.f32 %v47, %v47
    %v52 = vmul.f32 %v48, %v48
    %v53 = vld [vmem:[#allocation7] sm:$0xff]
    %v54 = vadd.f32 %v49, %v50
    %v55 = vadd.f32 %v53, %v54
    %56 = vst [vmem:[#allocation7] sm:$0xff] %v55
    %v57 = vld [vmem:[#allocation8] sm:$0xff]
    %v58 = vadd.f32 %v51, %v52
    %v59 = vadd.f32 %v57, %v58
    %60 = vst [vmem:[#allocation8] sm:$0xff] %v59
    // Predicated region
    $region22: #{tpu_custom_call.1} parent=1 // pred_check
      _
    $region23: #{tpu_custom_call.1} parent=1 // pred_check_branch
      %62 = sbr.rel (0) target = $region25
    $region24: #{tpu_custom_call.1} parent=1 // pred_region
      %s64 = ssub.s32 128, 128
      %65 = vsyncadd [#allocation4], %s64
      %s67 = sshll.u32 [#allocation7], 4
      %s68 = int_to_ptr.vmem [resolvable:$true] %s67
      %70 = dma.vmem_to_hbm [thread:$0]  %s68, 128, %s2, [#allocation4]
    $region25: #{tpu_custom_call.1} parent=1 // pred_fallthru
      _
    // Predicated region
    $region26: #{tpu_custom_call.1} parent=1 // pred_check
      _
    $region27: #{tpu_custom_call.1} parent=1 // pred_check_branch
      %72 = sbr.rel (0) target = $region29
    $region28: #{tpu_custom_call.1} parent=1 // pred_region
      %s74 = ssub.s32 128, 128
      %75 = vsyncadd [#allocation9], %s74
      %s77 = sshll.u32 [#allocation8], 4
      %s78 = int_to_ptr.vmem [resolvable:$true] %s77
      %80 = dma.vmem_to_hbm [thread:$0]  %s78, 128, %s3, [#allocation9]
    $region29: #{tpu_custom_call.1} parent=1 // pred_fallthru
      _
    // Predicated region
    $region30: #{tpu_custom_call.1} parent=1 // pred_check
      _
    $region31: #{tpu_custom_call.1} parent=1 // pred_check_branch
      %82 = sbr.rel (0) target = $region33
    $region32: #{tpu_custom_call.1} parent=1 // pred_region
      %83 = dma.done [#allocation4], 128
    $region33: #{tpu_custom_call.1} parent=1 // pred_fallthru
      _
    // Predicated region
    $region34: #{tpu_custom_call.1} parent=1 // pred_check
      _
    $region35: #{tpu_custom_call.1} parent=1 // pred_check_branch
      %85 = sbr.rel (0) target = $region37
    $region36: #{tpu_custom_call.1} parent=1 // pred_region
      %86 = dma.done [#allocation9], 128
    $region37: #{tpu_custom_call.1} parent=1 // pred_fallthru
      _
    %87 = vsyncpa [#allocation3], 1
    %88 = vsyncpa [#allocation6], 1
    %89 = vsyncpa [#allocation4], 1
    %90 = vsyncpa [#allocation9], 1

</llo_original>
